<compile_context>
chip_gen: v7x
topology: tpu7x:2x2x1
jax: 0.10.0
libtpu: 0.0.40
codegen_flags: <defaults>
</compile_context>

<pallas_src>
import numpy as np
import jax
import jax.numpy as jnp
from jax.experimental import pallas as pl
from jax.experimental.pallas import tpu as pltpu


def word_attention_kernel(x_ref, mask_ref, wbig_ref, bbig_ref, wa_ref, ba_ref,
                          e_ref, r_ref, out_ref):
    # x_ref: (TN, L*(D+P)) f32 slab; per word position: ctx features then dis features.
    x = x_ref[...]

    # Fused attention_sent + attention_pos: one bf16 MXU matmul against the
    # block-diagonal weight kron(I_L, [Ws^T; Wp^T]) (L*(D+P), L*H), f32 accumulate.
    pre = jnp.dot(x.astype(jnp.bfloat16), wbig_ref[...],
                  preferred_element_type=jnp.float32) + bbig_ref[...]
    h = jnp.tanh(pre)                                            # (TN, L*H) f32

    # attention_all per word position: block-diagonal (L*H, L) -> logits (TN, L).
    logits = jnp.dot(h.astype(jnp.bfloat16), wa_ref[...],
                     preferred_element_type=jnp.float32) + ba_ref[...]

    # masked_fill(mask.bool(), -100000.0) + softmax over the word dim (lanes).
    masked = jnp.where(mask_ref[...] != 0, jnp.float32(-100000.0), logits)
    m = jnp.max(masked, axis=-1, keepdims=True)
    e = jnp.exp(masked - m)
    att = e * pl.reciprocal(jnp.sum(e, axis=-1, keepdims=True), approx=True)  # (TN, L)

    # Broadcast att over each word's feature columns ((TN,L) @ (L, L*(D+P))),
    # weight the slab, then contract over (word, feature) picking the ctx columns.
    a_exp = jnp.dot(att, e_ref[...], preferred_element_type=jnp.float32)
    out_ref[...] = jnp.dot(x * a_exp, r_ref[...],
                           preferred_element_type=jnp.float32)   # (TN, D)
    # TODO(synk): output stays (TN, D=16) -> masked (lane-sparse) stores; the fully
    # lane-dense (TN/8, 8*D) packing needs an in-kernel minor-dim reshape that is
    # not reliably lowerable, and output traffic is <1/8 of input traffic here.


def word_attention_forward(att_padding_matrix, context_before_att, dis_embedding,
                           params, block_rows=512):
    """params = (ws (H,D), bs (H,), wp (H,P), bp (H,), wa (1,H), ba (1,))."""
    ws, bs, wp, bp, wa, ba = params
    *lead, L, D = context_before_att.shape
    P = dis_embedding.shape[-1]
    H = ws.shape[0]
    F = D + P
    N = int(np.prod(lead)) if lead else 1
    f32 = jnp.float32

    # Build the (N, L*(D+P)) lane-dense input slab and the (N, L) mask.
    ctx = context_before_att.reshape(N, L, D).astype(f32)
    dis = dis_embedding.reshape(N, L, P).astype(f32)
    x = jnp.concatenate([ctx, dis], axis=-1).reshape(N, L * F)
    mask = jnp.broadcast_to(att_padding_matrix, tuple(lead) + (L, 1))
    mask = mask.reshape(N, L).astype(f32)

    # Tile the flattened batch dim; pad to a multiple of the (8-aligned) row tile.
    tn = max(8, min(int(block_rows), pl.cdiv(N, 8) * 8))
    tn = (tn // 8) * 8
    n_pad = pl.cdiv(N, tn) * tn
    if n_pad != N:
        x = jnp.pad(x, ((0, n_pad - N), (0, 0)))
        mask = jnp.pad(mask, ((0, n_pad - N), (0, 0)))

    # Constant block matrices (built once, VMEM-resident across all grid steps).
    eye_l = jnp.eye(L, dtype=f32)
    w_cat = jnp.concatenate([ws.T.astype(f32), wp.T.astype(f32)], axis=0)      # (F, H)
    w_big = jnp.kron(eye_l, w_cat).astype(jnp.bfloat16)                         # (L*F, L*H)
    b_big = jnp.tile((bs + bp).astype(f32), (L,)).reshape(1, L * H)             # (1, L*H)
    wa_big = jnp.kron(eye_l, wa.T.astype(f32)).astype(jnp.bfloat16)             # (L*H, L)
    ba2 = ba.reshape(1, 1).astype(f32)                                          # (1, 1)
    e_mat = jnp.kron(eye_l, jnp.ones((1, F), f32))                              # (L, L*F)
    r_mat = jnp.tile(jnp.concatenate([jnp.eye(D, dtype=f32),
                                      jnp.zeros((P, D), f32)], axis=0), (L, 1))  # (L*F, D)

    grid = (n_pad // tn,)
    out = pl.pallas_call(
        word_attention_kernel,
        out_shape=jax.ShapeDtypeStruct((n_pad, D), f32),
        grid=grid,
        in_specs=[
            pl.BlockSpec((tn, L * F), lambda i: (i, 0)),       # x slab (tiled over N)
            pl.BlockSpec((tn, L), lambda i: (i, 0)),           # mask  (tiled over N)
            pl.BlockSpec((L * F, L * H), lambda i: (0, 0)),    # fused weight (resident)
            pl.BlockSpec((1, L * H), lambda i: (0, 0)),        # fused bias
            pl.BlockSpec((L * H, L), lambda i: (0, 0)),        # attention_all weight
            pl.BlockSpec((1, 1), lambda i: (0, 0)),            # attention_all bias
            pl.BlockSpec((L, L * F), lambda i: (0, 0)),        # att lane-expansion
            pl.BlockSpec((L * F, D), lambda i: (0, 0)),        # weighted-sum reduction
        ],
        out_specs=pl.BlockSpec((tn, D), lambda i: (i, 0)),
        compiler_params=pltpu.CompilerParams(
            dimension_semantics=("parallel",),
            vmem_limit_bytes=32 * 1024 * 1024),
    )(x, mask, w_big, b_big, wa_big, ba2, e_mat, r_mat)

    return out[:N].reshape(tuple(lead) + (D,))


def ref_forward(mask, ctx, dis, ws, bs, wp, bp, wa, ba):
    """Pure-numpy reference mirroring the PyTorch forward exactly."""
    sent = ctx @ ws.T + bs
    dfea = dis @ wp.T + bp
    allf = np.tanh(sent + dfea) @ wa.T + ba                      # (..., L, 1)
    mb = np.broadcast_to(mask, allf.shape).astype(bool)
    allf = np.where(mb, -100000.0, allf)
    e = np.exp(allf - allf.max(axis=3, keepdims=True))
    att = e / e.sum(axis=3, keepdims=True)
    att = np.broadcast_to(att, ctx.shape)
    return (att * ctx).sum(axis=3)


if __name__ == "__main__":
    key = jax.random.PRNGKey(0)
    B, G, K, L = 2, 4, 3, 8          # N = 24 -> exercises multi-tile grid + row padding
    D_in, H, P_dim = 16, 32, 8

    ks = jax.random.split(key, 9)
    ctx = jax.random.normal(ks[0], (B, G, K, L, D_in), jnp.float32) * 0.5
    dis = jax.random.normal(ks[1], (B, G, K, L, P_dim), jnp.float32) * 0.5
    mask = (jax.random.uniform(ks[2], (B, G, K, L, 1)) > 0.7).astype(jnp.float32)

    # Deterministic synthetic parameters (shapes from nn.Linear in __init__).
    ws = jax.random.normal(ks[3], (H, D_in), jnp.float32) / np.sqrt(D_in)
    bs = jax.random.normal(ks[4], (H,), jnp.float32) * 0.1
    wp = jax.random.normal(ks[5], (H, P_dim), jnp.float32) / np.sqrt(P_dim)
    bp = jax.random.normal(ks[6], (H,), jnp.float32) * 0.1
    wa = jax.random.normal(ks[7], (1, H), jnp.float32) / np.sqrt(H)
    ba = jax.random.normal(ks[8], (1,), jnp.float32) * 0.1
    params = (ws, bs, wp, bp, wa, ba)

    out = word_attention_forward(mask, ctx, dis, params, block_rows=16)
    out = jax.block_until_ready(out)

    ref = ref_forward(np.asarray(mask), np.asarray(ctx), np.asarray(dis),
                      np.asarray(ws), np.asarray(bs), np.asarray(wp),
                      np.asarray(bp), np.asarray(wa), np.asarray(ba))
    np.testing.assert_allclose(np.asarray(out), ref, rtol=5e-2, atol=5e-2)
    print("KERNEL_OK")
</pallas_src>

<mosaic_0001>
module attributes {stable_mosaic.version = 11 : i64} {
  func.func @word_attention_kernel(%arg0: i32, %arg1: memref<16x192xf32, #tpu.memory_space<vmem>>, %arg2: memref<16x8xf32, #tpu.memory_space<vmem>>, %arg3: memref<192x256xbf16, #tpu.memory_space<vmem>>, %arg4: memref<1x256xf32, #tpu.memory_space<vmem>>, %arg5: memref<256x8xbf16, #tpu.memory_space<vmem>>, %arg6: memref<1x1xf32, #tpu.memory_space<vmem>>, %arg7: memref<8x192xf32, #tpu.memory_space<vmem>>, %arg8: memref<192x16xf32, #tpu.memory_space<vmem>>, %arg9: memref<16x16xf32, #tpu.memory_space<vmem>>) attributes {dimension_semantics = [#tpu.dimension_semantics<parallel>], iteration_bounds = array<i64: 2>, scalar_prefetch = 0 : i64, scratch_operands = 0 : i64, tpu.core_type = #tpu.core_type<tc>, window_params = [{transform_indices = @transform_0, window_bounds = array<i64: 16, 192>}, {transform_indices = @transform_1, window_bounds = array<i64: 16, 8>}, {pipeline_mode = #tpu.pipeline_mode<synchronous>, transform_indices = @transform_2, window_bounds = array<i64: 192, 256>}, {pipeline_mode = #tpu.pipeline_mode<synchronous>, transform_indices = @transform_3, window_bounds = array<i64: 1, 256>}, {pipeline_mode = #tpu.pipeline_mode<synchronous>, transform_indices = @transform_4, window_bounds = array<i64: 256, 8>}, {pipeline_mode = #tpu.pipeline_mode<synchronous>, transform_indices = @transform_5, window_bounds = array<i64: 1, 1>}, {pipeline_mode = #tpu.pipeline_mode<synchronous>, transform_indices = @transform_6, window_bounds = array<i64: 8, 192>}, {pipeline_mode = #tpu.pipeline_mode<synchronous>, transform_indices = @transform_7, window_bounds = array<i64: 192, 16>}, {transform_indices = @transform_8, window_bounds = array<i64: 16, 16>}]} {
    %c0 = arith.constant 0 : index
    %c0_0 = arith.constant 0 : index
    %0 = vector.load %arg1[%c0, %c0_0] : memref<16x192xf32, #tpu.memory_space<vmem>>, vector<16x192xf32>
    %1 = arith.truncf %0 : vector<16x192xf32> to vector<16x192xbf16>
    %c0_1 = arith.constant 0 : index
    %c0_2 = arith.constant 0 : index
    %2 = vector.load %arg3[%c0_1, %c0_2] : memref<192x256xbf16, #tpu.memory_space<vmem>>, vector<192x256xbf16>
    %cst = arith.constant dense<0.000000e+00> : vector<16x256xf32>
    %3 = tpu.matmul %1, %2, %cst {dimension_numbers = #tpu.dot_dimension_numbers<[1], [0], [0], [1], [0, 0, 1, 1], [], []>} : vector<16x192xbf16>, vector<192x256xbf16>, vector<16x256xf32> -> vector<16x256xf32>
    %c0_3 = arith.constant 0 : index
    %c0_4 = arith.constant 0 : index
    %4 = vector.load %arg4[%c0_3, %c0_4] : memref<1x256xf32, #tpu.memory_space<vmem>>, vector<1x256xf32>
    %5 = vector.broadcast %4 : vector<1x256xf32> to vector<16x256xf32>
    %6 = arith.addf %3, %5 : vector<16x256xf32>
    %7 = math.tanh %6 : vector<16x256xf32>
    %8 = arith.truncf %7 : vector<16x256xf32> to vector<16x256xbf16>
    %c0_5 = arith.constant 0 : index
    %c0_6 = arith.constant 0 : index
    %9 = vector.load %arg5[%c0_5, %c0_6] : memref<256x8xbf16, #tpu.memory_space<vmem>>, vector<256x8xbf16>
    %cst_7 = arith.constant dense<0.000000e+00> : vector<16x8xf32>
    %10 = tpu.matmul %8, %9, %cst_7 {dimension_numbers = #tpu.dot_dimension_numbers<[1], [0], [0], [1], [0, 0, 1, 1], [], []>} : vector<16x256xbf16>, vector<256x8xbf16>, vector<16x8xf32> -> vector<16x8xf32>
    %c0_8 = arith.constant 0 : index
    %c0_9 = arith.constant 0 : index
    %11 = vector.load %arg6[%c0_8, %c0_9] : memref<1x1xf32, #tpu.memory_space<vmem>>, vector<1x1xf32>
    %12 = vector.broadcast %11 : vector<1x1xf32> to vector<16x8xf32>
    %13 = arith.addf %10, %12 : vector<16x8xf32>
    %c0_10 = arith.constant 0 : index
    %c0_11 = arith.constant 0 : index
    %14 = vector.load %arg2[%c0_10, %c0_11] : memref<16x8xf32, #tpu.memory_space<vmem>>, vector<16x8xf32>
    %cst_12 = arith.constant 0.000000e+00 : f32
    %15 = vector.broadcast %cst_12 : f32 to vector<16x8xf32>
    %16 = arith.cmpf one, %14, %15 : vector<16x8xf32>
    %cst_13 = arith.constant -1.000000e+05 : f32
    %17 = vector.broadcast %cst_13 : f32 to vector<16x8xf32>
    %18 = arith.select %16, %17, %13 : vector<16x8xi1>, vector<16x8xf32>
    %cst_14 = arith.constant dense<0xFF800000> : vector<16xf32>
    %19 = vector.multi_reduction <maximumf>, %18, %cst_14 [1] : vector<16x8xf32> to vector<16xf32>
    %20 = vector.shape_cast %19 : vector<16xf32> to vector<16x1xf32>
    %21 = vector.broadcast %20 : vector<16x1xf32> to vector<16x8xf32>
    %22 = arith.subf %18, %21 : vector<16x8xf32>
    %23 = math.exp %22 : vector<16x8xf32>
    %cst_15 = arith.constant dense<0.000000e+00> : vector<16xf32>
    %24 = vector.multi_reduction <add>, %23, %cst_15 [1] : vector<16x8xf32> to vector<16xf32>
    %25 = vector.shape_cast %24 : vector<16xf32> to vector<16x1xf32>
    %26 = tpu.reciprocal %25 {approx = true} : vector<16x1xf32> -> vector<16x1xf32>
    %27 = vector.broadcast %26 : vector<16x1xf32> to vector<16x8xf32>
    %28 = arith.mulf %23, %27 : vector<16x8xf32>
    %c0_16 = arith.constant 0 : index
    %c0_17 = arith.constant 0 : index
    %29 = vector.load %arg7[%c0_16, %c0_17] : memref<8x192xf32, #tpu.memory_space<vmem>>, vector<8x192xf32>
    %cst_18 = arith.constant dense<0.000000e+00> : vector<16x192xf32>
    %30 = tpu.matmul %28, %29, %cst_18 {dimension_numbers = #tpu.dot_dimension_numbers<[1], [0], [0], [1], [0, 0, 1, 1], [], []>} : vector<16x8xf32>, vector<8x192xf32>, vector<16x192xf32> -> vector<16x192xf32>
    %31 = arith.mulf %0, %30 : vector<16x192xf32>
    %c0_19 = arith.constant 0 : index
    %c0_20 = arith.constant 0 : index
    %32 = vector.load %arg8[%c0_19, %c0_20] : memref<192x16xf32, #tpu.memory_space<vmem>>, vector<192x16xf32>
    %cst_21 = arith.constant dense<0.000000e+00> : vector<16x16xf32>
    %33 = tpu.matmul %31, %32, %cst_21 {dimension_numbers = #tpu.dot_dimension_numbers<[1], [0], [0], [1], [0, 0, 1, 1], [], []>} : vector<16x192xf32>, vector<192x16xf32>, vector<16x16xf32> -> vector<16x16xf32>
    %c0_22 = arith.constant 0 : index
    %c0_23 = arith.constant 0 : index
    %34 = vector.load %arg9[%c0_22, %c0_23] : memref<16x16xf32, #tpu.memory_space<vmem>>, vector<16x16xf32>
    tpu.vector_store %arg9[%c0_22, %c0_23], %33 {strides = array<i32>} : memref<16x16xf32, #tpu.memory_space<vmem>>, vector<16x16xf32>,
    return
  }
  func.func @transform_0(%arg0: i32) -> (i32, i32) {
    %c0_i32 = arith.constant 0 : i32
    %c0_i32_0 = arith.constant 0 : i32
    return %arg0, %c0_i32 : i32, i32
  }
  func.func @transform_1(%arg0: i32) -> (i32, i32) {
    %c0_i32 = arith.constant 0 : i32
    %c0_i32_0 = arith.constant 0 : i32
    return %arg0, %c0_i32 : i32, i32
  }
  func.func @transform_2(%arg0: i32) -> (i32, i32) {
    %c0_i32 = arith.constant 0 : i32
    %c0_i32_0 = arith.constant 0 : i32
    %c0_i32_1 = arith.constant 0 : i32
    return %c0_i32, %c0_i32_0 : i32, i32
  }
  func.func @transform_3(%arg0: i32) -> (i32, i32) {
    %c0_i32 = arith.constant 0 : i32
    %c0_i32_0 = arith.constant 0 : i32
    %c0_i32_1 = arith.constant 0 : i32
    return %c0_i32, %c0_i32_0 : i32, i32
  }
  func.func @transform_4(%arg0: i32) -> (i32, i32) {
    %c0_i32 = arith.constant 0 : i32
    %c0_i32_0 = arith.constant 0 : i32
    %c0_i32_1 = arith.constant 0 : i32
    return %c0_i32, %c0_i32_0 : i32, i32
  }
  func.func @transform_5(%arg0: i32) -> (i32, i32) {
    %c0_i32 = arith.constant 0 : i32
    %c0_i32_0 = arith.constant 0 : i32
    %c0_i32_1 = arith.constant 0 : i32
    return %c0_i32, %c0_i32_0 : i32, i32
  }
  func.func @transform_6(%arg0: i32) -> (i32, i32) {
    %c0_i32 = arith.constant 0 : i32
    %c0_i32_0 = arith.constant 0 : i32
    %c0_i32_1 = arith.constant 0 : i32
    return %c0_i32, %c0_i32_0 : i32, i32
  }
  func.func @transform_7(%arg0: i32) -> (i32, i32) {
    %c0_i32 = arith.constant 0 : i32
    %c0_i32_0 = arith.constant 0 : i32
    %c0_i32_1 = arith.constant 0 : i32
    return %c0_i32, %c0_i32_0 : i32, i32
  }
  func.func @transform_8(%arg0: i32) -> (i32, i32) {
    %c0_i32 = arith.constant 0 : i32
    %c0_i32_0 = arith.constant 0 : i32
    return %arg0, %c0_i32 : i32, i32
  }
}

</mosaic_0001>

<llo_original>
// kernel: tpu_custom_call.1
$region0: #{tpu_custom_call.1}
  #allocation0 [shape = 'u32[]', space=smem, size = 0x4, offset = 0x4, fixed_abs, tag = 'smem constant byte address 0x4 - core index']
  #allocation1 [shape = 'u32[144,128]{1,0:T(1,128)}', space=vmem, size = 0x12000, scoped, tag = 'internal scratch']
  #allocation2 [shape = 'f32[1,1]{1,0:T(1,128)S(1)}', space=vmem, size = 0x200, scoped, tag = 'scoped memory for tpu_custom_call.1']
  %s0 = inlined_call_operand.vmem [shape: f32[32,192], index: 0, kind: input, shape index: {}]
  %s1 = inlined_call_operand.vmem [shape: f32[32,8], index: 1, kind: input, shape index: {}]
  %s2 = inlined_call_operand.vmem [shape: bf16[192,256], index: 2, kind: input, shape index: {}]
  %s3 = inlined_call_operand.vmem [shape: f32[1,256], index: 3, kind: input, shape index: {}]
  %s4 = inlined_call_operand.vmem [shape: bf16[256,8], index: 4, kind: input, shape index: {}]
  %s5 = inlined_call_operand.<no memory space> [shape: f32[1,1], index: 5, kind: input, shape index: {}]
  %s6 = inlined_call_operand.vmem [shape: f32[8,192], index: 6, kind: input, shape index: {}]
  %s7 = inlined_call_operand.vmem [shape: f32[192,16], index: 7, kind: input, shape index: {}]
  %s8 = inlined_call_operand.vmem [shape: f32[32,16], index: 8, kind: output, shape index: {}]
  %s9 = sld [smem:[#allocation0]]
  $region65: #{tpu_custom_call.1} parent=0
    _
  %s11 = ssub.s32 1, %s9
  %s12 = scalar_select 0, %s11, %s9
  %v13 = vstv %s5
  %14 = vst [vmem:[#allocation2] sm:$0x1] %v13
  loop: start=0, step=1, limit=4
  $region2: #{tpu_custom_call.1} parent=0 // loop_pre_header
    _
  $region3: #{tpu_custom_call.1} parent=0 // loop_header
    %s16 = sphi 0, %s20
    %p17 = scmp.ge.s32.totalorder %s16, 4
    %s26 = sphi 0, %s28
    %s29 = sphi 0, %s26
    %s30 = sphi 0, %s29
    %s46 = sphi 0, %s30
    %s52 = sphi 0, %s54
    %s55 = sphi 0, %s52
    %s56 = sphi 0, %s55
    %s72 = sphi 0, %s56
    %s76 = sphi 0, %s76
    %s78 = sphi 0, %s76
    %s79 = sphi 0, %s78
    %s93 = sphi 0, %s79
    %s97 = sphi 0, %s97
    %s99 = sphi 0, %s97
    %s100 = sphi 0, %s99
    %s114 = sphi 0, %s100
    %s118 = sphi 0, %s118
    %s120 = sphi 0, %s118
    %s121 = sphi 0, %s120
    %s135 = sphi 0, %s121
    %s139 = sphi 0, %s139
    %s141 = sphi 0, %s139
    %s142 = sphi 0, %s141
    %s156 = sphi 0, %s142
    %s160 = sphi 0, %s160
    %s162 = sphi 0, %s160
    %s163 = sphi 0, %s162
    %s177 = sphi 0, %s163
    %s181 = sphi 0, %s181
    %s183 = sphi 0, %s181
    %s184 = sphi 0, %s183
    %s198 = sphi 0, %s184
    %s204 = sphi 0, %s206
    %s207 = sphi 0, %s204
    %s208 = sphi 0, %s207
    %s224 = sphi 0, %s208
  $region4: #{tpu_custom_call.1} parent=0 // loop_header_branch
    %19 = sbr.rel (%p17) target = $region8
  $region5: #{tpu_custom_call.1} parent=0 // loop_body
    %s21 = ssub.s32 %s16, 1
    %s22 = ssub.s32 %s16, 2
    %s23 = sadd.s32 %s16, 1
    %s24 = ssub.s32 %s16, %s23
    %p25 = scmp.eq.s32.totalorder %s24, 0
    %s27 = sadd.s32 %s26, 1
    %s28 = scalar_select %p25, %s26, %s27
    %p31 = pneg %p25
    %p32 = scmp.eq.s32.totalorder %s16, 1
    %p33 = por %p31, %p32
    %p34 = scmp.ne.s32.totalorder %s26, %s29
    %p35 = scmp.eq.s32.totalorder %s16, 0
    %p36 = por %p34, %p35
    %p37 = scmp.ne.s32.totalorder %s26, %s29
    %p38 = scmp.eq.s32.totalorder %s21, 1
    %p39 = por %p37, %p38
    %p40 = scmp.ne.s32.totalorder %s29, %s30
    %p41 = scmp.eq.s32.totalorder %s21, 0
    %p42 = por %p40, %p41
    %p43 = scmp.ne.s32.totalorder %s29, %s30
    %p44 = scmp.eq.s32.totalorder %s22, 1
    %p45 = por %p43, %p44
    %p47 = scmp.ne.s32.totalorder %s30, %s46
    %p48 = scmp.eq.s32.totalorder %s22, 0
    %p49 = por %p47, %p48
    %s50 = ssub.s32 %s16, %s23
    %p51 = scmp.eq.s32.totalorder %s50, 0
    %s53 = sadd.s32 %s52, 1
    %s54 = scalar_select %p51, %s52, %s53
    %p57 = pneg %p51
    %p58 = scmp.eq.s32.totalorder %s16, 1
    %p59 = por %p57, %p58
    %p60 = scmp.ne.s32.totalorder %s52, %s55
    %p61 = scmp.eq.s32.totalorder %s16, 0
    %p62 = por %p60, %p61
    %p63 = scmp.ne.s32.totalorder %s52, %s55
    %p64 = scmp.eq.s32.totalorder %s21, 1
    %p65 = por %p63, %p64
    %p66 = scmp.ne.s32.totalorder %s55, %s56
    %p67 = scmp.eq.s32.totalorder %s21, 0
    %p68 = por %p66, %p67
    %p69 = scmp.ne.s32.totalorder %s55, %s56
    %p70 = scmp.eq.s32.totalorder %s22, 1
    %p71 = por %p69, %p70
    %p73 = scmp.ne.s32.totalorder %s56, %s72
    %p74 = scmp.eq.s32.totalorder %s22, 0
    %p75 = por %p73, %p74
    %s77 = sadd.s32 %s76, 1
    %p80 = scmp.eq.s32.totalorder %s16, 1
    %p81 = scmp.ne.s32.totalorder %s76, %s78
    %p82 = scmp.eq.s32.totalorder %s16, 0
    %p83 = por %p81, %p82
    %p84 = scmp.ne.s32.totalorder %s76, %s78
    %p85 = scmp.eq.s32.totalorder %s21, 1
    %p86 = por %p84, %p85
    %p87 = scmp.ne.s32.totalorder %s78, %s79
    %p88 = scmp.eq.s32.totalorder %s21, 0
    %p89 = por %p87, %p88
    %p90 = scmp.ne.s32.totalorder %s78, %s79
    %p91 = scmp.eq.s32.totalorder %s22, 1
    %p92 = por %p90, %p91
    %p94 = scmp.ne.s32.totalorder %s79, %s93
    %p95 = scmp.eq.s32.totalorder %s22, 0
    %p96 = por %p94, %p95
    %s98 = sadd.s32 %s97, 1
    %p101 = scmp.eq.s32.totalorder %s16, 1
    %p102 = scmp.ne.s32.totalorder %s97, %s99
    %p103 = scmp.eq.s32.totalorder %s16, 0
    %p104 = por %p102, %p103
    %p105 = scmp.ne.s32.totalorder %s97, %s99
    %p106 = scmp.eq.s32.totalorder %s21, 1
    %p107 = por %p105, %p106
    %p108 = scmp.ne.s32.totalorder %s99, %s100
    %p109 = scmp.eq.s32.totalorder %s21, 0
    %p110 = por %p108, %p109
    %p111 = scmp.ne.s32.totalorder %s99, %s100
    %p112 = scmp.eq.s32.totalorder %s22, 1
    %p113 = por %p111, %p112
    %p115 = scmp.ne.s32.totalorder %s100, %s114
    %p116 = scmp.eq.s32.totalorder %s22, 0
    %p117 = por %p115, %p116
    %s119 = sadd.s32 %s118, 1
    %p122 = scmp.eq.s32.totalorder %s16, 1
    %p123 = scmp.ne.s32.totalorder %s118, %s120
    %p124 = scmp.eq.s32.totalorder %s16, 0
    %p125 = por %p123, %p124
    %p126 = scmp.ne.s32.totalorder %s118, %s120
    %p127 = scmp.eq.s32.totalorder %s21, 1
    %p128 = por %p126, %p127
    %p129 = scmp.ne.s32.totalorder %s120, %s121
    %p130 = scmp.eq.s32.totalorder %s21, 0
    %p131 = por %p129, %p130
    %p132 = scmp.ne.s32.totalorder %s120, %s121
    %p133 = scmp.eq.s32.totalorder %s22, 1
    %p134 = por %p132, %p133
    %p136 = scmp.ne.s32.totalorder %s121, %s135
    %p137 = scmp.eq.s32.totalorder %s22, 0
    %p138 = por %p136, %p137
    %s140 = sadd.s32 %s139, 1
    %p143 = scmp.eq.s32.totalorder %s16, 1
    %p144 = scmp.ne.s32.totalorder %s139, %s141
    %p145 = scmp.eq.s32.totalorder %s16, 0
    %p146 = por %p144, %p145
    %p147 = scmp.ne.s32.totalorder %s139, %s141
    %p148 = scmp.eq.s32.totalorder %s21, 1
    %p149 = por %p147, %p148
    %p150 = scmp.ne.s32.totalorder %s141, %s142
    %p151 = scmp.eq.s32.totalorder %s21, 0
    %p152 = por %p150, %p151
    %p153 = scmp.ne.s32.totalorder %s141, %s142
    %p154 = scmp.eq.s32.totalorder %s22, 1
    %p155 = por %p153, %p154
    %p157 = scmp.ne.s32.totalorder %s142, %s156
    %p158 = scmp.eq.s32.totalorder %s22, 0
    %p159 = por %p157, %p158
    %s161 = sadd.s32 %s160, 1
    %p164 = scmp.eq.s32.totalorder %s16, 1
    %p165 = scmp.ne.s32.totalorder %s160, %s162
    %p166 = scmp.eq.s32.totalorder %s16, 0
    %p167 = por %p165, %p166
    %p168 = scmp.ne.s32.totalorder %s160, %s162
    %p169 = scmp.eq.s32.totalorder %s21, 1
    %p170 = por %p168, %p169
    %p171 = scmp.ne.s32.totalorder %s162, %s163
    %p172 = scmp.eq.s32.totalorder %s21, 0
    %p173 = por %p171, %p172
    %p174 = scmp.ne.s32.totalorder %s162, %s163
    %p175 = scmp.eq.s32.totalorder %s22, 1
    %p176 = por %p174, %p175
    %p178 = scmp.ne.s32.totalorder %s163, %s177
    %p179 = scmp.eq.s32.totalorder %s22, 0
    %p180 = por %p178, %p179
    %s182 = sadd.s32 %s181, 1
    %p185 = scmp.eq.s32.totalorder %s16, 1
    %p186 = scmp.ne.s32.totalorder %s181, %s183
    %p187 = scmp.eq.s32.totalorder %s16, 0
    %p188 = por %p186, %p187
    %p189 = scmp.ne.s32.totalorder %s181, %s183
    %p190 = scmp.eq.s32.totalorder %s21, 1
    %p191 = por %p189, %p190
    %p192 = scmp.ne.s32.totalorder %s183, %s184
    %p193 = scmp.eq.s32.totalorder %s21, 0
    %p194 = por %p192, %p193
    %p195 = scmp.ne.s32.totalorder %s183, %s184
    %p196 = scmp.eq.s32.totalorder %s22, 1
    %p197 = por %p195, %p196
    %p199 = scmp.ne.s32.totalorder %s184, %s198
    %p200 = scmp.eq.s32.totalorder %s22, 0
    %p201 = por %p199, %p200
    %s202 = ssub.s32 %s16, %s23
    %p203 = scmp.eq.s32.totalorder %s202, 0
    %s205 = sadd.s32 %s204, 1
    %s206 = scalar_select %p203, %s204, %s205
    %p209 = pneg %p203
    %p210 = scmp.eq.s32.totalorder %s16, 1
    %p211 = por %p209, %p210
    %p212 = scmp.ne.s32.totalorder %s204, %s207
    %p213 = scmp.eq.s32.totalorder %s16, 0
    %p214 = por %p212, %p213
    %p215 = scmp.ne.s32.totalorder %s204, %s207
    %p216 = scmp.eq.s32.totalorder %s21, 1
    %p217 = por %p215, %p216
    %p218 = scmp.ne.s32.totalorder %s207, %s208
    %p219 = scmp.eq.s32.totalorder %s21, 0
    %p220 = por %p218, %p219
    %p221 = scmp.ne.s32.totalorder %s207, %s208
    %p222 = scmp.eq.s32.totalorder %s22, 1
    %p223 = por %p221, %p222
    %p225 = scmp.ne.s32.totalorder %s208, %s224
    %p226 = scmp.eq.s32.totalorder %s22, 0
    %p227 = por %p225, %p226
    %p228 = scmp.le.s32.totalorder 1, %s16
    %p229 = scmp.lt.s32.totalorder %s16, 3
    %p230 = pnand %p228, %p229
    %p231 = pneg %p230
    // Predicated region
    $region9: #{tpu_custom_call.1} parent=5 // pred_check
      _
    $region10: #{tpu_custom_call.1} parent=5 // pred_check_branch
      %233 = sbr.rel (%p230) target = $region12
    $region11: #{tpu_custom_call.1} parent=5 // pred_region
      %s234 = ssub.s32 %s16, 1
      // Predicated region
      $region13: #{tpu_custom_call.1} parent=11 // pred_check
        %p235 = pneg %p89
      $region14: #{tpu_custom_call.1} parent=11 // pred_check_branch
        %237 = sbr.rel (%p235) target = $region16
      $region15: #{tpu_custom_call.1} parent=11 // pred_region
        _
      $region16: #{tpu_custom_call.1} parent=11 // pred_fallthru
        _
      // Predicated region
      $region17: #{tpu_custom_call.1} parent=11 // pred_check
        %p238 = pneg %p110
      $region18: #{tpu_custom_call.1} parent=11 // pred_check_branch
        %240 = sbr.rel (%p238) target = $region20
      $region19: #{tpu_custom_call.1} parent=11 // pred_region
        _
      $region20: #{tpu_custom_call.1} parent=11 // pred_fallthru
        _
      // Predicated region
      $region21: #{tpu_custom_call.1} parent=11 // pred_check
        %p241 = pneg %p131
      $region22: #{tpu_custom_call.1} parent=11 // pred_check_branch
        %243 = sbr.rel (%p241) target = $region24
      $region23: #{tpu_custom_call.1} parent=11 // pred_region
        _
      $region24: #{tpu_custom_call.1} parent=11 // pred_fallthru
        _
      // Predicated region
      $region25: #{tpu_custom_call.1} parent=11 // pred_check
        %p244 = pneg %p152
      $region26: #{tpu_custom_call.1} parent=11 // pred_check_branch
        %246 = sbr.rel (%p244) target = $region28
      $region27: #{tpu_custom_call.1} parent=11 // pred_region
        _
      $region28: #{tpu_custom_call.1} parent=11 // pred_fallthru
        _
      // Predicated region
      $region29: #{tpu_custom_call.1} parent=11 // pred_check
        %p247 = pneg %p173
      $region30: #{tpu_custom_call.1} parent=11 // pred_check_branch
        %249 = sbr.rel (%p247) target = $region32
      $region31: #{tpu_custom_call.1} parent=11 // pred_region
        _
      $region32: #{tpu_custom_call.1} parent=11 // pred_fallthru
        _
      // Predicated region
      $region33: #{tpu_custom_call.1} parent=11 // pred_check
        %p250 = pneg %p194
      $region34: #{tpu_custom_call.1} parent=11 // pred_check_branch
        %252 = sbr.rel (%p250) target = $region36
      $region35: #{tpu_custom_call.1} parent=11 // pred_region
        _
      $region36: #{tpu_custom_call.1} parent=11 // pred_fallthru
        _
    $region12: #{tpu_custom_call.1} parent=5 // pred_fallthru
      _
    %p253 = scmp.lt.s32.totalorder %s16, 2
    // Predicated region
    $region37: #{tpu_custom_call.1} parent=5 // pred_check
      %p254 = pneg %p253
    $region38: #{tpu_custom_call.1} parent=5 // pred_check_branch
      %256 = sbr.rel (%p254) target = $region40
    $region39: #{tpu_custom_call.1} parent=5 // pred_region
      // Predicated region
      $region41: #{tpu_custom_call.1} parent=39 // pred_check
        %p257 = pneg %p36
      $region42: #{tpu_custom_call.1} parent=39 // pred_check_branch
        %259 = sbr.rel (%p257) target = $region44
      $region43: #{tpu_custom_call.1} parent=39 // pred_region
        %s260 = smul.u32 2, %s16
        %p261 = scmp.lt.s32.totalorder %s260, 3
        %s262 = scalar_select %p261, %s260, 3
        %s263 = smul.addr %s262, 2
        %s264 = smul.addr %s263, 8
        %s265 = scalar_lea.vmem %s0, %s264
        %s266 = smul.u32 2, %s16
      $region44: #{tpu_custom_call.1} parent=39 // pred_fallthru
        _
      // Predicated region
      $region45: #{tpu_custom_call.1} parent=39 // pred_check
        %p267 = pneg %p62
      $region46: #{tpu_custom_call.1} parent=39 // pred_check_branch
        %269 = sbr.rel (%p267) target = $region48
      $region47: #{tpu_custom_call.1} parent=39 // pred_region
        %s270 = smul.u32 2, %s16
        %p271 = scmp.lt.s32.totalorder %s270, 3
        %s272 = scalar_select %p271, %s270, 3
        %s273 = smul.addr %s272, 8
        %s274 = scalar_lea.vmem %s1, %s273
        %s275 = smul.u32 2, %s16
      $region48: #{tpu_custom_call.1} parent=39 // pred_fallthru
        _
    $region40: #{tpu_custom_call.1} parent=5 // pred_fallthru
      _
    %p276 = scmp.le.s32.totalorder 1, %s16
    %p277 = scmp.lt.s32.totalorder %s16, 3
    %p278 = pnand %p276, %p277
    %p279 = pneg %p278
    // Predicated region
    $region49: #{tpu_custom_call.1} parent=5 // pred_check
      _
    $region50: #{tpu_custom_call.1} parent=5 // pred_check_branch
      %281 = sbr.rel (%p278) target = $region52
    $region51: #{tpu_custom_call.1} parent=5 // pred_region
      %s282 = ssub.s32 %s16, 1
      %s283 = smul.u32 2, %s21
      %p284 = scmp.lt.s32.totalorder %s283, 3
      %s285 = scalar_select %p284, %s283, 3
      %s286 = smul.addr %s285, 2
      %s287 = smul.addr %s286, 8
      %s288 = scalar_lea.vmem %s0, %s287
      %p289 = pneg %p42
      %p290 = pneg %p39
      %s291 = smul.u32 2, %s21
      %p292 = scmp.lt.s32.totalorder %s291, 3
      %s293 = scalar_select %p292, %s291, 3
      %s294 = smul.addr %s293, 8
      %s295 = scalar_lea.vmem %s1, %s294
      %p296 = pneg %p68
      %p297 = pneg %p65
      %p298 = pneg %p89
      %p299 = pneg %p86
      %p300 = pneg %p110
      %p301 = pneg %p107
      %p302 = pneg %p131
      %p303 = pneg %p128
      %p304 = pneg %p152
      %p305 = pneg %p149
      %p306 = pneg %p173
      %p307 = pneg %p170
      %p308 = pneg %p194
      %p309 = pneg %p191
      %p310 = pneg %p220
      %p311 = pneg %p217
      %s312 = smul.u32 2, %s21
      %p313 = scmp.lt.s32.totalorder %s312, 3
      %s314 = scalar_select %p313, %s312, 3
      %s315 = smul.addr %s314, 8
      %s316 = scalar_lea.vmem %s8, %s315
      %s317 = smul.u32 2, %s21
      %p318 = scmp.lt.s32.totalorder %s317, 3
      %s319 = scalar_select %p318, %s317, 3
      %s320 = smul.addr %s319, 2
      %s321 = smul.addr %s320, 8
      %s322 = scalar_lea.vmem %s0, %s321
      %s323 = smul.u32 2, %s21
      %s324 = smul.u32 2, %s21
      %p325 = scmp.lt.s32.totalorder %s324, 3
      %s326 = scalar_select %p325, %s324, 3
      %s327 = smul.addr %s326, 8
      %s328 = scalar_lea.vmem %s1, %s327
      %s329 = smul.u32 2, %s21
      %s330 = smul.u32 2, %s21
      %p331 = scmp.lt.s32.totalorder %s330, 3
      %s332 = scalar_select %p331, %s330, 3
      %s333 = smul.addr %s332, 8
      %s334 = scalar_lea.vmem %s8, %s333
      %s335 = smul.u32 2, %s21
      %v337 = vld [vmem:[%s322] sm:$0xff]
      %v338 = vld [vmem:[%s322 + $0x8] sm:$0xff]
      %v339 = vld [vmem:[%s322 + $0x10] sm:$0xff]
      %v340 = vld [vmem:[%s322 + $0x18] sm:$0xff]
      %v341 = vpack.c.bf16 %v339, %v337
      %v342 = vpack.c.bf16 %v340, %v338
      %v343 = vld [vmem:[%s2] sm:$0xff]
      %v344 = vld [vmem:[%s2 + $0x8] sm:$0xff]
      %v345 = vld [vmem:[%s2 + $0x10] sm:$0xff]
      %v346 = vld [vmem:[%s2 + $0x18] sm:$0xff]
      %v347 = vld [vmem:[%s2 + $0x20] sm:$0xff]
      %v348 = vld [vmem:[%s2 + $0x28] sm:$0xff]
      %v349 = vld [vmem:[%s2 + $0x30] sm:$0xff]
      %v350 = vld [vmem:[%s2 + $0x38] sm:$0xff]
      %v351 = vld [vmem:[%s2 + $0x40] sm:$0xff]
      %v352 = vld [vmem:[%s2 + $0x48] sm:$0xff]
      %v353 = vld [vmem:[%s2 + $0x50] sm:$0xff]
      %v354 = vld [vmem:[%s2 + $0x58] sm:$0xff]
      %v355 = vld [vmem:[%s2 + $0x60] sm:$0xff]
      %v356 = vld [vmem:[%s2 + $0x68] sm:$0xff]
      %v357 = vld [vmem:[%s2 + $0x70] sm:$0xff]
      %v358 = vld [vmem:[%s2 + $0x78] sm:$0xff]
      %v359 = vld [vmem:[%s2 + $0x80] sm:$0xff]
      %v360 = vld [vmem:[%s2 + $0x88] sm:$0xff]
      %v361 = vld [vmem:[%s2 + $0x90] sm:$0xff]
      %v362 = vld [vmem:[%s2 + $0x98] sm:$0xff]
      %v363 = vld [vmem:[%s2 + $0xa0] sm:$0xff]
      %v364 = vld [vmem:[%s2 + $0xa8] sm:$0xff]
      %v365 = vld [vmem:[%s2 + $0xb0] sm:$0xff]
      %v366 = vld [vmem:[%s2 + $0xb8] sm:$0xff]
      %v367 = vld [vmem:[%s3] sm:$0x3]
      %v369 = vlaneseq
      %v370 = vshrl.u32 %v369, 7
      %v371 = vsub.s32 0, %v370
      %v372 = vrot.slane %v367, %v371
      %v373 = vlaneseq
      %v374 = vshrl.u32 %v373, 7
      %v375 = vsub.s32 1, %v374
      %v376 = vrot.slane %v367, %v375
      %v403 = vunpack.c.l.b16 %v343
      %v404 = vunpack.c.h.b16 %v343
      %v405 = vunpack.c.l.b16 %v344
      %v406 = vunpack.c.h.b16 %v344
      %v407 = vunpack.c.l.b16 %v345
      %v408 = vunpack.c.h.b16 %v345
      %v409 = vunpack.c.l.b16 %v346
      %v410 = vunpack.c.h.b16 %v346
      %v411 = vunpack.c.l.b16 %v347
      %v412 = vunpack.c.h.b16 %v347
      %v413 = vunpack.c.l.b16 %v348
      %v414 = vunpack.c.h.b16 %v348
      %v415 = vunpack.c.l.b16 %v349
      %v416 = vunpack.c.h.b16 %v349
      %v417 = vunpack.c.l.b16 %v350
      %v418 = vunpack.c.h.b16 %v350
      %v419 = vunpack.c.l.b16 %v351
      %v420 = vunpack.c.h.b16 %v351
      %v421 = vunpack.c.l.b16 %v352
      %v422 = vunpack.c.h.b16 %v352
      %v423 = vunpack.c.l.b16 %v353
      %v424 = vunpack.c.h.b16 %v353
      %v425 = vunpack.c.l.b16 %v354
      %v426 = vunpack.c.h.b16 %v354
      %v427 = vunpack.c.l.b16 %v355
      %v428 = vunpack.c.h.b16 %v355
      %v429 = vunpack.c.l.b16 %v356
      %v430 = vunpack.c.h.b16 %v356
      %v431 = vunpack.c.l.b16 %v357
      %v432 = vunpack.c.h.b16 %v357
      %v433 = vunpack.c.l.b16 %v358
      %v434 = vunpack.c.h.b16 %v358
      %v435 = vunpack.c.l.b16 %v359
      %v436 = vunpack.c.h.b16 %v359
      %v437 = vunpack.c.l.b16 %v360
      %v438 = vunpack.c.h.b16 %v360
      %v439 = vunpack.c.l.b16 %v361
      %v440 = vunpack.c.h.b16 %v361
      %v441 = vunpack.c.l.b16 %v362
      %v442 = vunpack.c.h.b16 %v362
      %v443 = vunpack.c.l.b16 %v363
      %v444 = vunpack.c.h.b16 %v363
      %v445 = vunpack.c.l.b16 %v364
      %v446 = vunpack.c.h.b16 %v364
      %v447 = vunpack.c.l.b16 %v365
      %v448 = vunpack.c.h.b16 %v365
      %v449 = vunpack.c.l.b16 %v366
      %v450 = vunpack.c.h.b16 %v366
      %v451 = vpack.c.b16 %v405, %v403
      %v452 = vpack.c.b16 %v406, %v404
      %v453 = vpack.c.b16 %v409, %v407
      %v454 = vpack.c.b16 %v410, %v408
      %v455 = vpack.c.b16 %v413, %v411
      %v456 = vpack.c.b16 %v414, %v412
      %v457 = vpack.c.b16 %v417, %v415
      %v458 = vpack.c.b16 %v418, %v416
      %v459 = vpack.c.b16 %v421, %v419
      %v460 = vpack.c.b16 %v422, %v420
      %v461 = vpack.c.b16 %v425, %v423
      %v462 = vpack.c.b16 %v426, %v424
      %v463 = vpack.c.b16 %v429, %v427
      %v464 = vpack.c.b16 %v430, %v428
      %v465 = vpack.c.b16 %v433, %v431
      %v466 = vpack.c.b16 %v434, %v432
      %v467 = vpack.c.b16 %v437, %v435
      %v468 = vpack.c.b16 %v438, %v436
      %v469 = vpack.c.b16 %v441, %v439
      %v470 = vpack.c.b16 %v442, %v440
      %v471 = vpack.c.b16 %v445, %v443
      %v472 = vpack.c.b16 %v446, %v444
      %v473 = vpack.c.b16 %v449, %v447
      %v474 = vpack.c.b16 %v450, %v448
      %vm499 = vcmask 523264
      %v501 = vsel %vm499, %v342, 0
      %503 = vmatprep.subr.bf16.mxu0 %v452
      %504 = vmatpush1.bf16.msra.mxu0 %v451
      %505 = vmatprep.subr.bf16.mxu0 %v454
      %506 = vmatpush1.bf16.msra.mxu0 %v453
      %507 = vmatprep.subr.bf16.mxu0 %v456
      %508 = vmatpush1.bf16.msra.mxu0 %v455
      %509 = vmatprep.subr.bf16.mxu0 %v458
      %510 = vmatpush1.bf16.msra.mxu0 %v457
      %511 = vmatprep.subr.bf16.mxu0 %v460
      %512 = vmatpush1.bf16.msra.mxu0 %v459
      %513 = vmatprep.subr.bf16.mxu0 %v462
      %514 = vmatpush1.bf16.msra.mxu0 %v461
      %515 = vmatprep.subr.bf16.mxu0 %v464
      %516 = vmatpush1.bf16.msra.mxu0 %v463
      %517 = vmatprep.subr.bf16.mxu0 %v466
      %518 = vmatpush1.bf16.msra.mxu0 %v465
      %519 = vmatprep.subr.bf16.mxu0 %v468
      %520 = vmatpush1.bf16.msra.mxu0 %v467
      %521 = vmatprep.subr.bf16.mxu0 %v470
      %522 = vmatpush1.bf16.msra.mxu0 %v469
      %523 = vmatprep.subr.bf16.mxu0 %v472
      %524 = vmatpush1.bf16.msra.mxu0 %v471
      %525 = vmatprep.subr.bf16.mxu0 %v474
      %526 = vmatpush1.bf16.msra.mxu0 %v473
      %527 = vmatprep.subr.bf16.mxu0 0
      %528 = vmatpush1.bf16.msra.mxu0 0
      %529 = vmatprep.subr.bf16.mxu0 0
      %530 = vmatpush1.bf16.msra.mxu0 0
      %531 = vmatprep.subr.bf16.mxu0 0
      %532 = vmatpush1.bf16.msra.mxu0 0
      %533 = vmatprep.subr.bf16.mxu0 0
      %534 = vmatpush1.bf16.msra.mxu0 0
      %535 = vmatprep.mubr.bf16.mxu0 %v501
      %536 = vmatmul.mubr.bf16.gmra.mrb[0].mxu0 %v341
      %v537 = vpop.f32.mrb[0].mxu0
      %v538 = vadd.f32 %v372, %v537
      %v539 = vpop.f32.mrb[0].mxu0
      %v540 = vadd.f32 %v376, %v539
      %v541 = vpop.f32.mrb[0].mxu0
      %v542 = vadd.f32 %v372, %v541
      %v543 = vpop.f32.mrb[0].mxu0
      %v544 = vadd.f32 %v376, %v543
      %545 = vdwg.mxu0
      %v546 = vtanh.pop %v538
      %v547 = vtanh.pop %v540
      %v548 = vtanh.pop %v542
      %v549 = vtanh.pop %v544
      %v550 = vpack.c.bf16 %v548, %v546
      %v551 = vpack.c.bf16 %v549, %v547
      %v552 = vld [vmem:[%s4] sm:$0xf]
      %v553 = vld [vmem:[%s4 + $0x4] sm:$0xf]
      %v554 = vld [vmem:[%s4 + $0x8] sm:$0xf]
      %v555 = vld [vmem:[%s4 + $0xc] sm:$0xf]
      %v556 = vld [vmem:[%s4 + $0x10] sm:$0xf]
      %v557 = vld [vmem:[%s4 + $0x14] sm:$0xf]
      %v558 = vld [vmem:[%s4 + $0x18] sm:$0xf]
      %v559 = vld [vmem:[%s4 + $0x1c] sm:$0xf]
      %v560 = vld [vmem:[%s4 + $0x20] sm:$0xf]
      %v561 = vld [vmem:[%s4 + $0x24] sm:$0xf]
      %v562 = vld [vmem:[%s4 + $0x28] sm:$0xf]
      %v563 = vld [vmem:[%s4 + $0x2c] sm:$0xf]
      %v564 = vld [vmem:[%s4 + $0x30] sm:$0xf]
      %v565 = vld [vmem:[%s4 + $0x34] sm:$0xf]
      %v566 = vld [vmem:[%s4 + $0x38] sm:$0xf]
      %v567 = vld [vmem:[%s4 + $0x3c] sm:$0xf]
      %v568 = vld [vmem:[%s4 + $0x40] sm:$0xf]
      %v569 = vld [vmem:[%s4 + $0x44] sm:$0xf]
      %v570 = vld [vmem:[%s4 + $0x48] sm:$0xf]
      %v571 = vld [vmem:[%s4 + $0x4c] sm:$0xf]
      %v572 = vld [vmem:[%s4 + $0x50] sm:$0xf]
      %v573 = vld [vmem:[%s4 + $0x54] sm:$0xf]
      %v574 = vld [vmem:[%s4 + $0x58] sm:$0xf]
      %v575 = vld [vmem:[%s4 + $0x5c] sm:$0xf]
      %v576 = vld [vmem:[%s4 + $0x60] sm:$0xf]
      %v577 = vld [vmem:[%s4 + $0x64] sm:$0xf]
      %v578 = vld [vmem:[%s4 + $0x68] sm:$0xf]
      %v579 = vld [vmem:[%s4 + $0x6c] sm:$0xf]
      %v580 = vld [vmem:[%s4 + $0x70] sm:$0xf]
      %v581 = vld [vmem:[%s4 + $0x74] sm:$0xf]
      %v582 = vld [vmem:[%s4 + $0x78] sm:$0xf]
      %v583 = vld [vmem:[%s4 + $0x7c] sm:$0xf]
      %v584 = vld [vmem:[#allocation2] sm:$0x1]
      %v586 = vlaneseq
      %v587 = vshrl.u32 %v586, 7
      %v588 = vsub.s32 0, %v587
      %v589 = vrot.slane %v584, %v588
      %590 = vset.pattern.permute.xlu0 0
      %591 = vperm.xlu0 %590, %v589
      %v592 = vpop.permute.xlu0 %591
      %v626 = vunpack.c.l.b16 %v552
      %v627 = vunpack.c.l.b16 %v553
      %v628 = vunpack.c.l.b16 %v554
      %v629 = vunpack.c.l.b16 %v555
      %v630 = vunpack.c.l.b16 %v556
      %v631 = vunpack.c.l.b16 %v557
      %v632 = vunpack.c.l.b16 %v558
      %v633 = vunpack.c.l.b16 %v559
      %v634 = vunpack.c.l.b16 %v560
      %v635 = vunpack.c.l.b16 %v561
      %v636 = vunpack.c.l.b16 %v562
      %v637 = vunpack.c.l.b16 %v563
      %v638 = vunpack.c.l.b16 %v564
      %v639 = vunpack.c.l.b16 %v565
      %v640 = vunpack.c.l.b16 %v566
      %v641 = vunpack.c.l.b16 %v567
      %v642 = vunpack.c.l.b16 %v568
      %v643 = vunpack.c.l.b16 %v569
      %v644 = vunpack.c.l.b16 %v570
      %v645 = vunpack.c.l.b16 %v571
      %v646 = vunpack.c.l.b16 %v572
      %v647 = vunpack.c.l.b16 %v573
      %v648 = vunpack.c.l.b16 %v574
      %v649 = vunpack.c.l.b16 %v575
      %v650 = vunpack.c.l.b16 %v576
      %v651 = vunpack.c.l.b16 %v577
      %v652 = vunpack.c.l.b16 %v578
      %v653 = vunpack.c.l.b16 %v579
      %v654 = vunpack.c.l.b16 %v580
      %v655 = vunpack.c.l.b16 %v581
      %v656 = vunpack.c.l.b16 %v582
      %v657 = vunpack.c.l.b16 %v583
      %v658 = vpack.c.b16 %v627, %v626
      %v659 = vpack.c.b16 %v629, %v628
      %v660 = vpack.c.b16 %v631, %v630
      %v661 = vpack.c.b16 %v633, %v632
      %v662 = vpack.c.b16 %v635, %v634
      %v663 = vpack.c.b16 %v637, %v636
      %v664 = vpack.c.b16 %v639, %v638
      %v665 = vpack.c.b16 %v641, %v640
      %v666 = vpack.c.b16 %v643, %v642
      %v667 = vpack.c.b16 %v645, %v644
      %v668 = vpack.c.b16 %v647, %v646
      %v669 = vpack.c.b16 %v649, %v648
      %v670 = vpack.c.b16 %v651, %v650
      %v671 = vpack.c.b16 %v653, %v652
      %v672 = vpack.c.b16 %v655, %v654
      %v673 = vpack.c.b16 %v657, %v656
      %690 = vmatprep.subr.bf16.mxu0 0
      %691 = vmatpush1.bf16.msra.mxu0 %v658
      %692 = vmatprep.subr.bf16.mxu0 0
      %693 = vmatpush1.bf16.msra.mxu0 %v659
      %694 = vmatprep.subr.bf16.mxu0 0
      %695 = vmatpush1.bf16.msra.mxu0 %v660
      %696 = vmatprep.subr.bf16.mxu0 0
      %697 = vmatpush1.bf16.msra.mxu0 %v661
      %698 = vmatprep.subr.bf16.mxu0 0
      %699 = vmatpush1.bf16.msra.mxu0 %v662
      %700 = vmatprep.subr.bf16.mxu0 0
      %701 = vmatpush1.bf16.msra.mxu0 %v663
      %702 = vmatprep.subr.bf16.mxu0 0
      %703 = vmatpush1.bf16.msra.mxu0 %v664
      %704 = vmatprep.subr.bf16.mxu0 0
      %705 = vmatpush1.bf16.msra.mxu0 %v665
      %706 = vmatprep.subr.bf16.mxu0 0
      %707 = vmatpush1.bf16.msra.mxu0 %v666
      %708 = vmatprep.subr.bf16.mxu0 0
      %709 = vmatpush1.bf16.msra.mxu0 %v667
      %710 = vmatprep.subr.bf16.mxu0 0
      %711 = vmatpush1.bf16.msra.mxu0 %v668
      %712 = vmatprep.subr.bf16.mxu0 0
      %713 = vmatpush1.bf16.msra.mxu0 %v669
      %714 = vmatprep.subr.bf16.mxu0 0
      %715 = vmatpush1.bf16.msra.mxu0 %v670
      %716 = vmatprep.subr.bf16.mxu0 0
      %717 = vmatpush1.bf16.msra.mxu0 %v671
      %718 = vmatprep.subr.bf16.mxu0 0
      %719 = vmatpush1.bf16.msra.mxu0 %v672
      %720 = vmatprep.subr.bf16.mxu0 0
      %721 = vmatpush1.bf16.msra.mxu0 %v673
      %722 = vmatprep.mubr.bf16.mxu0 %v551
      %723 = vmatmul.mubr.bf16.gmra.mrb[0].mxu0 %v550
      %v724 = vpop.f32.mrb[0].mxu0
      %v725 = vadd.f32 %v592, %v724
      %v726 = vpop.f32.mrb[0].mxu0
      %v727 = vpop.f32.mrb[0].mxu0
      %v728 = vadd.f32 %v592, %v727
      %v729 = vpop.f32.mrb[0].mxu0
      %730 = vdwg.mxu0
      %v731 = vld [vmem:[%s328] sm:$0xff]
      %v732 = vld [vmem:[%s328 + $0x8] sm:$0xff]
      %vm733 = vcmp.ne.f32.partialorder %v731, 0.0
      %vm734 = vcmp.ne.f32.partialorder %v732, 0.0
      %v735 = vsel %vm733, -100000.0, %v725
      %v736 = vsel %vm734, -100000.0, %v728
      %vm737 = vcmask 64512
      %v738 = vsel %vm737, %v735, -inf
      %739 = vmax.xlane.f32.xlu0 %v738
      %v740 = vpop.xlane.xlu0 %739
      %v741 = vsel %vm737, %v736, -inf
      %742 = vmax.xlane.f32.xlu0 %v741
      %v743 = vpop.xlane.xlu0 %742
      %v744 = vsub.f32 %v735, %v740
      %v745 = vsub.f32 %v736, %v743
      %v746 = vmul.f32 %v744, 1.442695
      %v747 = vpow.pop %v746
      %v748 = vmul.f32 %v745, 1.442695
      %v749 = vpow.pop %v748
      %v750 = vsel %vm737, %v747, 0.0
      %751 = vadd.xlane.f32.xlu0 %v750
      %v752 = vpop.xlane.xlu0 %751
      %v753 = vsel %vm737, %v749, 0.0
      %754 = vadd.xlane.f32.xlu0 %v753
      %v755 = vpop.xlane.xlu0 %754
      %v756 = vrcp.pop %v752
      %v757 = vrcp.pop %v755
      %v758 = vmul.f32 %v747, %v756
      %v759 = vmul.f32 %v749, %v757
      %v760 = vld [vmem:[%s6] sm:$0xff]
      %v761 = vld [vmem:[%s6 + $0x8] sm:$0xff]
      %v763 = vsel %vm737, %v758, 0
      %v766 = vsel %vm737, %v759, 0
      %768 = vmatprep.subr.mxu0 %v761
      %769 = vmatpush1.msra.mxu0 %v760
      %770 = vmatprep.subr.mxu0 0.0
      %771 = vmatpush1.msra.mxu0 0.0
      %772 = vmatprep.subr.mxu0 0.0
      %773 = vmatpush1.msra.mxu0 0.0
      %774 = vmatprep.subr.mxu0 0.0
      %775 = vmatpush1.msra.mxu0 0.0
      %776 = vmatprep.subr.mxu0 0.0
      %777 = vmatpush1.msra.mxu0 0.0
      %778 = vmatprep.subr.mxu0 0.0
      %779 = vmatpush1.msra.mxu0 0.0
      %780 = vmatprep.subr.mxu0 0.0
      %781 = vmatpush1.msra.mxu0 0.0
      %782 = vmatprep.subr.mxu0 0.0
      %783 = vmatpush1.msra.mxu0 0.0
      %784 = vmatprep.subr.mxu0 0.0
      %785 = vmatpush1.msra.mxu0 0.0
      %786 = vmatprep.subr.mxu0 0.0
      %787 = vmatpush1.msra.mxu0 0.0
      %788 = vmatprep.subr.mxu0 0.0
      %789 = vmatpush1.msra.mxu0 0.0
      %790 = vmatprep.subr.mxu0 0.0
      %791 = vmatpush1.msra.mxu0 0.0
      %792 = vmatprep.subr.mxu0 0.0
      %793 = vmatpush1.msra.mxu0 0.0
      %794 = vmatprep.subr.mxu0 0.0
      %795 = vmatpush1.msra.mxu0 0.0
      %796 = vmatprep.subr.mxu0 0.0
      %797 = vmatpush1.msra.mxu0 0.0
      %798 = vmatprep.subr.mxu0 0.0
      %799 = vmatpush1.msra.mxu0 0.0
      %800 = vmatprep.subr.mxu0 0.0
      %801 = vmatpush1.msra.mxu0 0.0
      %802 = vmatprep.subr.mxu0 0.0
      %803 = vmatpush1.msra.mxu0 0.0
      %804 = vmatprep.subr.mxu0 0.0
      %805 = vmatpush1.msra.mxu0 0.0
      %806 = vmatprep.subr.mxu0 0.0
      %807 = vmatpush1.msra.mxu0 0.0
      %808 = vmatprep.subr.mxu0 0.0
      %809 = vmatpush1.msra.mxu0 0.0
      %810 = vmatprep.subr.mxu0 0.0
      %811 = vmatpush1.msra.mxu0 0.0
      %812 = vmatprep.subr.mxu0 0.0
      %813 = vmatpush1.msra.mxu0 0.0
      %814 = vmatprep.subr.mxu0 0.0
      %815 = vmatpush1.msra.mxu0 0.0
      %816 = vmatprep.subr.mxu0 0.0
      %817 = vmatpush1.msra.mxu0 0.0
      %818 = vmatprep.subr.mxu0 0.0
      %819 = vmatpush1.msra.mxu0 0.0
      %820 = vmatprep.subr.mxu0 0.0
      %821 = vmatpush1.msra.mxu0 0.0
      %822 = vmatprep.subr.mxu0 0.0
      %823 = vmatpush1.msra.mxu0 0.0
      %824 = vmatprep.subr.mxu0 0.0
      %825 = vmatpush1.msra.mxu0 0.0
      %826 = vmatprep.subr.mxu0 0.0
      %827 = vmatpush1.msra.mxu0 0.0
      %828 = vmatprep.subr.mxu0 0.0
      %829 = vmatpush1.msra.mxu0 0.0
      %830 = vmatprep.subr.mxu0 0.0
      %831 = vmatpush1.msra.mxu0 0.0
      %832 = vmatprep.mubr.f32.mxu0 0.0
      %833 = vmatmul.mubr.f32.gmra.mrb[0].mxu0 %v763
      %v834 = vpop.f32.mrb[0].mxu0
      %v835 = vadd.f32 0.0, %v834
      %v836 = vpop.f32.mrb[0].mxu0
      %v837 = vadd.f32 0.0, %v836
      %838 = vmatprep.mubr.f32.mxu0 0.0
      %839 = vmatmul.mubr.f32.gmra.mrb[0].mxu0 %v766
      %v840 = vpop.f32.mrb[0].mxu0
      %v841 = vadd.f32 0.0, %v840
      %v842 = vpop.f32.mrb[0].mxu0
      %v843 = vadd.f32 0.0, %v842
      %844 = vdwg.mxu0
      %v845 = vmul.f32 %v337, %v835
      %v846 = vmul.f32 %v338, %v837
      %v847 = vmul.f32 %v339, %v841
      %v848 = vmul.f32 %v340, %v843
      %v849 = vld [vmem:[%s7] sm:$0xff]
      %v850 = vld [vmem:[%s7 + $0x8] sm:$0xff]
      %v851 = vld [vmem:[%s7 + $0x10] sm:$0xff]
      %v852 = vld [vmem:[%s7 + $0x18] sm:$0xff]
      %v853 = vld [vmem:[%s7 + $0x20] sm:$0xff]
      %v854 = vld [vmem:[%s7 + $0x28] sm:$0xff]
      %v855 = vld [vmem:[%s7 + $0x30] sm:$0xff]
      %v856 = vld [vmem:[%s7 + $0x38] sm:$0xff]
      %v857 = vld [vmem:[%s7 + $0x40] sm:$0xff]
      %v858 = vld [vmem:[%s7 + $0x48] sm:$0xff]
      %v859 = vld [vmem:[%s7 + $0x50] sm:$0xff]
      %v860 = vld [vmem:[%s7 + $0x58] sm:$0xff]
      %v861 = vld [vmem:[%s7 + $0x60] sm:$0xff]
      %v862 = vld [vmem:[%s7 + $0x68] sm:$0xff]
      %v863 = vld [vmem:[%s7 + $0x70] sm:$0xff]
      %v864 = vld [vmem:[%s7 + $0x78] sm:$0xff]
      %v865 = vld [vmem:[%s7 + $0x80] sm:$0xff]
      %v866 = vld [vmem:[%s7 + $0x88] sm:$0xff]
      %v867 = vld [vmem:[%s7 + $0x90] sm:$0xff]
      %v868 = vld [vmem:[%s7 + $0x98] sm:$0xff]
      %v869 = vld [vmem:[%s7 + $0xa0] sm:$0xff]
      %v870 = vld [vmem:[%s7 + $0xa8] sm:$0xff]
      %v871 = vld [vmem:[%s7 + $0xb0] sm:$0xff]
      %v872 = vld [vmem:[%s7 + $0xb8] sm:$0xff]
      %v874 = vsel %vm499, %v846, 0
      %v877 = vsel %vm499, %v848, 0
      %879 = vmatprep.subr.mxu0 0.0
      %880 = vmatpush1.msra.mxu0 %v849
      %881 = vmatprep.subr.mxu0 0.0
      %882 = vmatpush1.msra.mxu0 %v850
      %883 = vmatprep.subr.mxu0 0.0
      %884 = vmatpush1.msra.mxu0 %v851
      %885 = vmatprep.subr.mxu0 0.0
      %886 = vmatpush1.msra.mxu0 %v852
      %887 = vmatprep.subr.mxu0 0.0
      %888 = vmatpush1.msra.mxu0 %v853
      %889 = vmatprep.subr.mxu0 0.0
      %890 = vmatpush1.msra.mxu0 %v854
      %891 = vmatprep.subr.mxu0 0.0
      %892 = vmatpush1.msra.mxu0 %v855
      %893 = vmatprep.subr.mxu0 0.0
      %894 = vmatpush1.msra.mxu0 %v856
      %895 = vmatprep.subr.mxu0 0.0
      %896 = vmatpush1.msra.mxu0 %v857
      %897 = vmatprep.subr.mxu0 0.0
      %898 = vmatpush1.msra.mxu0 %v858
      %899 = vmatprep.subr.mxu0 0.0
      %900 = vmatpush1.msra.mxu0 %v859
      %901 = vmatprep.subr.mxu0 0.0
      %902 = vmatpush1.msra.mxu0 %v860
      %903 = vmatprep.subr.mxu0 0.0
      %904 = vmatpush1.msra.mxu0 %v861
      %905 = vmatprep.subr.mxu0 0.0
      %906 = vmatpush1.msra.mxu0 %v862
      %907 = vmatprep.subr.mxu0 0.0
      %908 = vmatpush1.msra.mxu0 %v863
      %909 = vmatprep.subr.mxu0 0.0
      %910 = vmatpush1.msra.mxu0 %v864
      %911 = vmatprep.subr.mxu0 0.0
      %912 = vmatpush1.msra.mxu0 %v865
      %913 = vmatprep.subr.mxu0 0.0
      %914 = vmatpush1.msra.mxu0 %v866
      %915 = vmatprep.subr.mxu0 0.0
      %916 = vmatpush1.msra.mxu0 %v867
      %917 = vmatprep.subr.mxu0 0.0
      %918 = vmatpush1.msra.mxu0 %v868
      %919 = vmatprep.subr.mxu0 0.0
      %920 = vmatpush1.msra.mxu0 %v869
      %921 = vmatprep.subr.mxu0 0.0
      %922 = vmatpush1.msra.mxu0 %v870
      %923 = vmatprep.subr.mxu0 0.0
      %924 = vmatpush1.msra.mxu0 %v871
      %925 = vmatprep.subr.mxu0 0.0
      %926 = vmatpush1.msra.mxu0 %v872
      %927 = vmatprep.subr.mxu0 0.0
      %928 = vmatpush1.msra.mxu0 0.0
      %929 = vmatprep.subr.mxu0 0.0
      %930 = vmatpush1.msra.mxu0 0.0
      %931 = vmatprep.subr.mxu0 0.0
      %932 = vmatpush1.msra.mxu0 0.0
      %933 = vmatprep.subr.mxu0 0.0
      %934 = vmatpush1.msra.mxu0 0.0
      %935 = vmatprep.subr.mxu0 0.0
      %936 = vmatpush1.msra.mxu0 0.0
      %937 = vmatprep.subr.mxu0 0.0
      %938 = vmatpush1.msra.mxu0 0.0
      %939 = vmatprep.subr.mxu0 0.0
      %940 = vmatpush1.msra.mxu0 0.0
      %941 = vmatprep.subr.mxu0 0.0
      %942 = vmatpush1.msra.mxu0 0.0
      %943 = vmatprep.mubr.f32.mxu0 %v874
      %944 = vmatmul.mubr.f32.gmra.mrb[0].mxu0 %v845
      %v945 = vpop.f32.mrb[0].mxu0
      %v946 = vadd.f32 0.0, %v945
      %v947 = vpop.f32.mrb[0].mxu0
      %948 = vmatprep.mubr.f32.mxu0 %v877
      %949 = vmatmul.mubr.f32.gmra.mrb[0].mxu0 %v847
      %v950 = vpop.f32.mrb[0].mxu0
      %v951 = vadd.f32 0.0, %v950
      %v952 = vpop.f32.mrb[0].mxu0
      %953 = vdwg.mxu0
      %vm954 = vcmask 130048
      %955 = vst.msk [vmem:[%s334] sm:$0xff] %vm954, %v946
      %956 = vst.msk [vmem:[%s334 + $0x8] sm:$0xff] %vm954, %v951
      %s957 = smul.u32 2, %s21
      %p958 = scmp.lt.s32.totalorder %s957, 3
      %s959 = scalar_select %p958, %s957, 3
      %s960 = smul.addr %s959, 8
      %s961 = scalar_lea.vmem %s8, %s960
      // Predicated region
      $region53: #{tpu_custom_call.1} parent=51 // pred_check
        %p962 = pneg %p217
      $region54: #{tpu_custom_call.1} parent=51 // pred_check_branch
        %964 = sbr.rel (%p962) target = $region56
      $region55: #{tpu_custom_call.1} parent=51 // pred_region
        %s965 = smul.u32 2, %s21
      $region56: #{tpu_custom_call.1} parent=51 // pred_fallthru
        _
    $region52: #{tpu_custom_call.1} parent=5 // pred_fallthru
      _
    %p966 = scmp.le.s32.totalorder 2, %s16
    // Predicated region
    $region57: #{tpu_custom_call.1} parent=5 // pred_check
      %p967 = pneg %p966
    $region58: #{tpu_custom_call.1} parent=5 // pred_check_branch
      %969 = sbr.rel (%p967) target = $region60
    $region59: #{tpu_custom_call.1} parent=5 // pred_region
      %s970 = ssub.s32 %s16, 2
      // Predicated region
      $region61: #{tpu_custom_call.1} parent=59 // pred_check
        %p971 = pneg %p223
      $region62: #{tpu_custom_call.1} parent=59 // pred_check_branch
        %973 = sbr.rel (%p971) target = $region64
      $region63: #{tpu_custom_call.1} parent=59 // pred_region
        %s974 = smul.u32 2, %s22
        %p975 = scmp.lt.s32.totalorder %s974, 3
        %s976 = scalar_select %p975, %s974, 3
        %s977 = smul.addr %s976, 8
        %s978 = scalar_lea.vmem %s8, %s977
      $region64: #{tpu_custom_call.1} parent=59 // pred_fallthru
        _
    $region60: #{tpu_custom_call.1} parent=5 // pred_fallthru
      _
  $region6: #{tpu_custom_call.1} parent=0 // loop_footer
    %s20 = sadd.s32 1, %s16
  $region7: #{tpu_custom_call.1} parent=0 // loop_footer_branch
    %15 = sbr.rel target = $region3
  $region8: #{tpu_custom_call.1} parent=0 // loop_exit
    _

</llo_original>
